<compile_context>
chip_gen: v7x
topology: tpu7x:2x2x1
jax: 0.10.0
libtpu: 0.0.40
codegen_flags: <defaults>
</compile_context>

<pallas_src>
import jax
import jax.numpy as jnp
from jax.experimental import pallas as pl
from jax.experimental.pallas import tpu as pltpu

LN_EPS = 1e-5


def _normalize(s):
    mu = jnp.mean(s, axis=-1, keepdims=True)
    var = jnp.mean((s - mu) ** 2, axis=-1, keepdims=True)
    return (s - mu) * jax.lax.rsqrt(var + LN_EPS)


def _lstm_cell(x, h0, c0, w, bias, gamma, beta, E, H):
    """One LSTM step. h0's LN affine is pre-folded into w/bias; c0 gets full LN."""
    n_h0 = _normalize(h0)
    ln_c0 = _normalize(c0) * gamma + beta
    # TODO(synk): recurrent_dropout is identity in eval mode; training-mode dropout
    # (pltpu.prng_* / stateful_bernoulli) not implemented here.

    # Two MXU dots against static sublane slices of the fused weight (no lane concat).
    gates = (jnp.dot(x, w[:E, :], preferred_element_type=jnp.float32)
             + jnp.dot(n_h0, w[E:, :], preferred_element_type=jnp.float32)
             + bias)

    # Whole-vreg activations (gates is one vreg at 4H = 128), then lane slices.
    sig = jax.nn.sigmoid(gates)
    tnh = jnp.tanh(gates)
    i_g = sig[:, 0 * H:1 * H]
    f_g = sig[:, 1 * H:2 * H]
    g_g = tnh[:, 2 * H:3 * H]
    o_g = sig[:, 3 * H:4 * H]

    c1 = f_g * ln_c0 + i_g * g_g
    h1 = o_g * jnp.tanh(c1)
    return h1, c1


# ---------------------------------------------------------------------------
# Single-step kernel (== one Core.forward call).
# Operands: x (B,E), packed state (B,2H)=[h0|c0], fused weight (E+H,4H),
# packed constants (1,6H)=[bias|gamma|beta]. Output: packed (B,2H)=[h1|c1],
# aliased onto the packed-state input.
# ---------------------------------------------------------------------------
def core_step_kernel(x_ref, state_ref, w_ref, const_ref, hc_ref):
    H = state_ref.shape[-1] // 2
    E = x_ref.shape[-1]
    bias = const_ref[:, 0 * H:4 * H]
    gamma = const_ref[:, 4 * H:5 * H]
    beta = const_ref[:, 5 * H:6 * H]

    h0 = state_ref[:, :H]
    c0 = state_ref[:, H:]
    h1, c1 = _lstm_cell(x_ref[...], h0, c0, w_ref[...], bias, gamma, beta, E, H)

    # Two static slice stores (no concat vreg materialization).
    hc_ref[:, :H] = h1
    hc_ref[:, H:] = c1


# ---------------------------------------------------------------------------
# Multi-step (decode-loop) kernel: T chained Core.forward calls in one pallas_call.
# Weight/constants/initial state are VMEM-resident (index_map -> (0,0)); the packed
# state output block is resident across grid steps and used as the recurrence carry.
# ---------------------------------------------------------------------------
def core_loop_kernel(x_ref, state_in_ref, w_ref, const_ref, h_out_ref, state_ref):
    t = pl.program_id(0)
    H = state_in_ref.shape[-1] // 2
    E = x_ref.shape[-1]

    @pl.when(t == 0)
    def _():
        state_ref[...] = state_in_ref[...]

    bias = const_ref[:, 0 * H:4 * H]
    gamma = const_ref[:, 4 * H:5 * H]
    beta = const_ref[:, 5 * H:6 * H]

    h0 = state_ref[:, :H]
    c0 = state_ref[:, H:]
    h1, c1 = _lstm_cell(x_ref[...], h0, c0, w_ref[...], bias, gamma, beta, E, H)

    state_ref[:, :H] = h1
    state_ref[:, H:] = c1
    h_out_ref[...] = h1


# ---------------------------------------------------------------------------
# Parameter preparation (one-time; hoisted out of the hot path).
# ---------------------------------------------------------------------------
def prepare_params(params):
    gamma = params["ln_gamma"]   # (H,)
    beta = params["ln_beta"]     # (H,)
    wih_t = params["w_ih"].T     # (E, 4H)
    whh_t = params["w_hh"].T     # (H, 4H)
    # Fold the LN affine of the h0 path into the recurrent weights / bias:
    #   (n_h0*gamma + beta) @ W_hh^T == n_h0 @ (gamma[:,None]*W_hh^T) + beta @ W_hh^T
    whh_t_scaled = whh_t * gamma[:, None]
    w_fused = jnp.concatenate([wih_t, whh_t_scaled], axis=0)       # (E+H, 4H) f32
    bias = params["b_ih"] + params["b_hh"] + beta @ whh_t          # (4H,)
    consts = jnp.concatenate([bias, gamma, beta])[None, :]         # (1, 6H)
    return {"w_fused": w_fused, "consts": consts}


def _cost(B, E, H, T=1):
    return pl.CostEstimate(
        flops=2 * T * B * (E + H) * 4 * H,
        transcendentals=6 * T * B * H,                 # sigmoid/tanh/rsqrt pushes
        bytes_accessed=4 * ((E + H) * 4 * H + 6 * H + T * B * (E + 3 * H) + 2 * B * H),
    )


# ---------------------------------------------------------------------------
# Wrappers.
# ---------------------------------------------------------------------------
def core_forward(aggregation, state, prepared):
    """Single Core.forward. aggregation: (B, E); state: (h0, c0), each (1, B, H)."""
    B, E = aggregation.shape
    H = prepared["consts"].shape[-1] // 6
    state_packed = jnp.concatenate([state[0][0], state[1][0]], axis=-1)   # (B, 2H)

    vmem = pl.BlockSpec(memory_space=pltpu.MemorySpace.VMEM)
    hc = pl.pallas_call(
        core_step_kernel,
        out_shape=jax.ShapeDtypeStruct((B, 2 * H), jnp.float32),
        in_specs=[vmem] * 4,
        out_specs=vmem,
        input_output_aliases={1: 0},          # packed state updates in place
        cost_estimate=_cost(B, E, H, T=1),
    )(aggregation, state_packed, prepared["w_fused"], prepared["consts"])

    h1 = hc[:, :H]
    c1 = hc[:, H:]
    return h1, (h1[None], c1[None])


def core_forward_steps(aggregations, state, prepared):
    """T chained Core.forward calls fused in one kernel (decode loop).

    aggregations: (T, B, E); state: (h0, c0), each (1, B, H).
    Returns (h_seq (T, B, H), final core_state).
    """
    T, B, E = aggregations.shape
    H = prepared["consts"].shape[-1] // 6
    state_packed = jnp.concatenate([state[0][0], state[1][0]], axis=-1)   # (B, 2H)

    grid_spec = pltpu.PrefetchScalarGridSpec(
        num_scalar_prefetch=0,
        grid=(T,),
        in_specs=[
            pl.BlockSpec((None, B, E), lambda t: (t, 0, 0)),      # per-step input
            pl.BlockSpec((B, 2 * H), lambda t: (0, 0)),           # initial state (resident)
            pl.BlockSpec((E + H, 4 * H), lambda t: (0, 0)),       # fused weight (resident)
            pl.BlockSpec((1, 6 * H), lambda t: (0, 0)),           # constants (resident)
        ],
        out_specs=(
            pl.BlockSpec((None, B, H), lambda t: (t, 0, 0)),      # per-step h
            pl.BlockSpec((B, 2 * H), lambda t: (0, 0)),           # carried packed state
        ),
    )
    h_seq, hc = pl.pallas_call(
        core_loop_kernel,
        out_shape=(jax.ShapeDtypeStruct((T, B, H), jnp.float32),
                   jax.ShapeDtypeStruct((B, 2 * H), jnp.float32)),
        grid_spec=grid_spec,
        compiler_params=pltpu.CompilerParams(dimension_semantics=("arbitrary",)),
        cost_estimate=_cost(B, E, H, T=T),
    )(aggregations, state_packed, prepared["w_fused"], prepared["consts"])

    h1 = hc[:, :H]
    c1 = hc[:, H:]
    return h_seq, (h1[None], c1[None])


# ---------------------------------------------------------------------------
# Pure-JAX reference mirroring the PyTorch forward (eval mode).
# ---------------------------------------------------------------------------
def core_forward_ref(aggregation, state, params):
    h0, c0 = state[0][0], state[1][0]

    def layer_norm(s):
        mu = jnp.mean(s, axis=-1, keepdims=True)
        var = jnp.mean((s - mu) ** 2, axis=-1, keepdims=True)
        return (s - mu) / jnp.sqrt(var + LN_EPS) * params["ln_gamma"] + params["ln_beta"]

    h0 = layer_norm(h0)
    c0 = layer_norm(c0)
    gates = (aggregation @ params["w_ih"].T + params["b_ih"]
             + h0 @ params["w_hh"].T + params["b_hh"])
    i_g, f_g, g_g, o_g = jnp.split(gates, 4, axis=-1)
    c1 = jax.nn.sigmoid(f_g) * c0 + jax.nn.sigmoid(i_g) * jnp.tanh(g_g)
    h1 = jax.nn.sigmoid(o_g) * jnp.tanh(c1)
    return h1, (h1[None], c1[None])


def init_params(key, encoder_output_size, hidden_size):
    E, H = encoder_output_size, hidden_size
    k = 1.0 / jnp.sqrt(jnp.float32(H))
    ks = jax.random.split(key, 6)
    return {
        "w_ih": jax.random.uniform(ks[0], (4 * H, E), jnp.float32, -k, k),
        "w_hh": jax.random.uniform(ks[1], (4 * H, H), jnp.float32, -k, k),
        "b_ih": jax.random.uniform(ks[2], (4 * H,), jnp.float32, -k, k),
        "b_hh": jax.random.uniform(ks[3], (4 * H,), jnp.float32, -k, k),
        "ln_gamma": 1.0 + 0.1 * jax.random.normal(ks[4], (H,), jnp.float32),
        "ln_beta": 0.1 * jax.random.normal(ks[5], (H,), jnp.float32),
    }


if __name__ == "__main__":
    B, E, H, T = 8, 32, 32, 6   # batch, encoder_output_size, hidden_size, decode steps
    key = jax.random.PRNGKey(0)
    kp, kx, kh, kc, ks = jax.random.split(key, 5)

    params = init_params(kp, E, H)
    prepared = prepare_params(params)    # done once, outside the hot path

    aggregation = jax.random.normal(kx, (B, E), jnp.float32)
    h0 = jax.random.normal(kh, (1, B, H), jnp.float32)
    c0 = jax.random.normal(kc, (1, B, H), jnp.float32)
    state = (h0, c0)

    # --- single-step path (== Core.forward) ---
    out, (h1, c1) = jax.jit(core_forward)(aggregation, state, prepared)
    jax.block_until_ready((out, h1, c1))

    out_r, (h1_r, c1_r) = core_forward_ref(aggregation, state, params)
    assert jnp.allclose(out, out_r, atol=1e-4, rtol=1e-4)
    assert jnp.allclose(h1, h1_r, atol=1e-4, rtol=1e-4)
    assert jnp.allclose(c1, c1_r, atol=1e-4, rtol=1e-4)

    # --- fused decode-loop path (T chained Core.forward calls in one launch) ---
    aggregations = jax.random.normal(ks, (T, B, E), jnp.float32)
    h_seq, (h1m, c1m) = jax.jit(core_forward_steps)(aggregations, state, prepared)
    jax.block_until_ready((h_seq, h1m, c1m))

    st_r = state
    hs_ref = []
    for t in range(T):
        o_r, st_r = core_forward_ref(aggregations[t], st_r, params)
        hs_ref.append(o_r)
    hs_ref = jnp.stack(hs_ref)
    assert jnp.allclose(h_seq, hs_ref, atol=1e-4, rtol=1e-4)
    assert jnp.allclose(h1m, st_r[0], atol=1e-4, rtol=1e-4)
    assert jnp.allclose(c1m, st_r[1], atol=1e-4, rtol=1e-4)

    print("KERNEL_OK")
</pallas_src>

<mosaic_0001>
module attributes {stable_mosaic.version = 11 : i64} {
  func.func @core_step_kernel(%arg0: memref<8x32xf32, #tpu.memory_space<vmem>>, %arg1: memref<8x64xf32, #tpu.memory_space<vmem>>, %arg2: memref<64x128xf32, #tpu.memory_space<vmem>>, %arg3: memref<1x192xf32, #tpu.memory_space<vmem>>, %arg4: memref<8x64xf32, #tpu.memory_space<vmem>>) attributes {dimension_semantics = [], scalar_prefetch = 0 : i64, scratch_operands = 0 : i64, tpu.core_type = #tpu.core_type<tc>} {
    %c0 = arith.constant 0 : index
    %c0_0 = arith.constant 0 : index
    %0 = vector.load %arg3[%c0, %c0_0] : memref<1x192xf32, #tpu.memory_space<vmem>>, vector<1x128xf32>
    %c0_1 = arith.constant 0 : index
    %c128 = arith.constant 128 : index
    %1 = vector.load %arg3[%c0_1, %c128] : memref<1x192xf32, #tpu.memory_space<vmem>>, vector<1x32xf32>
    %c0_2 = arith.constant 0 : index
    %c160 = arith.constant 160 : index
    %2 = vector.load %arg3[%c0_2, %c160] : memref<1x192xf32, #tpu.memory_space<vmem>>, vector<1x32xf32>
    %c0_3 = arith.constant 0 : index
    %c0_4 = arith.constant 0 : index
    %3 = vector.load %arg1[%c0_3, %c0_4] : memref<8x64xf32, #tpu.memory_space<vmem>>, vector<8x32xf32>
    %c0_5 = arith.constant 0 : index
    %c32 = arith.constant 32 : index
    %4 = vector.load %arg1[%c0_5, %c32] : memref<8x64xf32, #tpu.memory_space<vmem>>, vector<8x32xf32>
    %c0_6 = arith.constant 0 : index
    %c0_7 = arith.constant 0 : index
    %5 = vector.load %arg0[%c0_6, %c0_7] : memref<8x32xf32, #tpu.memory_space<vmem>>, vector<8x32xf32>
    %c0_8 = arith.constant 0 : index
    %c0_9 = arith.constant 0 : index
    %6 = vector.load %arg2[%c0_8, %c0_9] : memref<64x128xf32, #tpu.memory_space<vmem>>, vector<64x128xf32>
    %cst = arith.constant dense<0.000000e+00> : vector<8xf32>
    %7 = vector.multi_reduction <add>, %3, %cst [1] : vector<8x32xf32> to vector<8xf32>
    %8 = vector.shape_cast %7 : vector<8xf32> to vector<8x1xf32>
    %cst_10 = arith.constant 3.200000e+01 : f32
    %9 = vector.broadcast %cst_10 : f32 to vector<8x1xf32>
    %10 = arith.divf %8, %9 : vector<8x1xf32>
    %11 = vector.broadcast %10 : vector<8x1xf32> to vector<8x32xf32>
    %12 = arith.subf %3, %11 : vector<8x32xf32>
    %13 = arith.mulf %12, %12 : vector<8x32xf32>
    %cst_11 = arith.constant dense<0.000000e+00> : vector<8xf32>
    %14 = vector.multi_reduction <add>, %13, %cst_11 [1] : vector<8x32xf32> to vector<8xf32>
    %15 = vector.shape_cast %14 : vector<8xf32> to vector<8x1xf32>
    %cst_12 = arith.constant 3.200000e+01 : f32
    %16 = vector.broadcast %cst_12 : f32 to vector<8x1xf32>
    %17 = arith.divf %15, %16 : vector<8x1xf32>
    %18 = vector.broadcast %10 : vector<8x1xf32> to vector<8x32xf32>
    %19 = arith.subf %3, %18 : vector<8x32xf32>
    %cst_13 = arith.constant 9.99999974E-6 : f32
    %20 = vector.broadcast %cst_13 : f32 to vector<8x1xf32>
    %21 = arith.addf %17, %20 : vector<8x1xf32>
    %22 = math.rsqrt %21 : vector<8x1xf32>
    %23 = vector.broadcast %22 : vector<8x1xf32> to vector<8x32xf32>
    %24 = arith.mulf %19, %23 : vector<8x32xf32>
    %cst_14 = arith.constant dense<0.000000e+00> : vector<8xf32>
    %25 = vector.multi_reduction <add>, %4, %cst_14 [1] : vector<8x32xf32> to vector<8xf32>
    %26 = vector.shape_cast %25 : vector<8xf32> to vector<8x1xf32>
    %cst_15 = arith.constant 3.200000e+01 : f32
    %27 = vector.broadcast %cst_15 : f32 to vector<8x1xf32>
    %28 = arith.divf %26, %27 : vector<8x1xf32>
    %29 = vector.broadcast %28 : vector<8x1xf32> to vector<8x32xf32>
    %30 = arith.subf %4, %29 : vector<8x32xf32>
    %31 = arith.mulf %30, %30 : vector<8x32xf32>
    %cst_16 = arith.constant dense<0.000000e+00> : vector<8xf32>
    %32 = vector.multi_reduction <add>, %31, %cst_16 [1] : vector<8x32xf32> to vector<8xf32>
    %33 = vector.shape_cast %32 : vector<8xf32> to vector<8x1xf32>
    %cst_17 = arith.constant 3.200000e+01 : f32
    %34 = vector.broadcast %cst_17 : f32 to vector<8x1xf32>
    %35 = arith.divf %33, %34 : vector<8x1xf32>
    %36 = vector.broadcast %28 : vector<8x1xf32> to vector<8x32xf32>
    %37 = arith.subf %4, %36 : vector<8x32xf32>
    %cst_18 = arith.constant 9.99999974E-6 : f32
    %38 = vector.broadcast %cst_18 : f32 to vector<8x1xf32>
    %39 = arith.addf %35, %38 : vector<8x1xf32>
    %40 = math.rsqrt %39 : vector<8x1xf32>
    %41 = vector.broadcast %40 : vector<8x1xf32> to vector<8x32xf32>
    %42 = arith.mulf %37, %41 : vector<8x32xf32>
    %43 = vector.broadcast %1 : vector<1x32xf32> to vector<8x32xf32>
    %44 = arith.mulf %42, %43 : vector<8x32xf32>
    %45 = vector.broadcast %2 : vector<1x32xf32> to vector<8x32xf32>
    %46 = arith.addf %44, %45 : vector<8x32xf32>
    %47 = vector.extract_strided_slice %6 {offsets = [0, 0], sizes = [32, 128], strides = [1, 1]} : vector<64x128xf32> to vector<32x128xf32>
    %cst_19 = arith.constant dense<0.000000e+00> : vector<8x128xf32>
    %48 = tpu.matmul %5, %47, %cst_19 {dimension_numbers = #tpu.dot_dimension_numbers<[1], [0], [0], [1], [0, 0, 1, 1], [], []>} : vector<8x32xf32>, vector<32x128xf32>, vector<8x128xf32> -> vector<8x128xf32>
    %49 = vector.extract_strided_slice %6 {offsets = [32, 0], sizes = [32, 128], strides = [1, 1]} : vector<64x128xf32> to vector<32x128xf32>
    %cst_20 = arith.constant dense<0.000000e+00> : vector<8x128xf32>
    %50 = tpu.matmul %24, %49, %cst_20 {dimension_numbers = #tpu.dot_dimension_numbers<[1], [0], [0], [1], [0, 0, 1, 1], [], []>} : vector<8x32xf32>, vector<32x128xf32>, vector<8x128xf32> -> vector<8x128xf32>
    %51 = arith.addf %48, %50 : vector<8x128xf32>
    %52 = vector.broadcast %0 : vector<1x128xf32> to vector<8x128xf32>
    %53 = arith.addf %51, %52 : vector<8x128xf32>
    %54 = arith.negf %53 : vector<8x128xf32>
    %55 = math.exp %54 : vector<8x128xf32>
    %cst_21 = arith.constant 1.000000e+00 : f32
    %56 = vector.broadcast %cst_21 : f32 to vector<8x128xf32>
    %57 = arith.addf %56, %55 : vector<8x128xf32>
    %58 = arith.divf %56, %57 : vector<8x128xf32>
    %59 = math.tanh %53 : vector<8x128xf32>
    %60 = vector.extract_strided_slice %58 {offsets = [0, 0], sizes = [8, 32], strides = [1, 1]} : vector<8x128xf32> to vector<8x32xf32>
    %61 = vector.extract_strided_slice %58 {offsets = [0, 32], sizes = [8, 32], strides = [1, 1]} : vector<8x128xf32> to vector<8x32xf32>
    %62 = vector.extract_strided_slice %59 {offsets = [0, 64], sizes = [8, 32], strides = [1, 1]} : vector<8x128xf32> to vector<8x32xf32>
    %63 = vector.extract_strided_slice %58 {offsets = [0, 96], sizes = [8, 32], strides = [1, 1]} : vector<8x128xf32> to vector<8x32xf32>
    %64 = arith.mulf %61, %46 : vector<8x32xf32>
    %65 = arith.mulf %60, %62 : vector<8x32xf32>
    %66 = arith.addf %64, %65 : vector<8x32xf32>
    %67 = math.tanh %66 : vector<8x32xf32>
    %68 = arith.mulf %63, %67 : vector<8x32xf32>
    %c0_22 = arith.constant 0 : index
    %c0_23 = arith.constant 0 : index
    %69 = vector.load %arg4[%c0_22, %c0_23] : memref<8x64xf32, #tpu.memory_space<vmem>>, vector<8x32xf32>
    tpu.vector_store %arg4[%c0_22, %c0_23], %68 {strides = array<i32>} : memref<8x64xf32, #tpu.memory_space<vmem>>, vector<8x32xf32>,
    %c0_24 = arith.constant 0 : index
    %c32_25 = arith.constant 32 : index
    %70 = vector.load %arg4[%c0_24, %c32_25] : memref<8x64xf32, #tpu.memory_space<vmem>>, vector<8x32xf32>
    tpu.vector_store %arg4[%c0_24, %c32_25], %66 {strides = array<i32>} : memref<8x64xf32, #tpu.memory_space<vmem>>, vector<8x32xf32>,
    return
  }
}

</mosaic_0001>

<llo_original>
// kernel: core_forward.1
$region0: #{core_forward.1}
  #allocation0 [shape = 'u32[]', space=smem, size = 0x4, offset = 0x4, fixed_abs, tag = 'smem constant byte address 0x4 - core index']
  #allocation1 [shape = 'u32[144,128]{1,0:T(1,128)}', space=vmem, size = 0x12000, scoped, tag = 'internal scratch']
  %s0 = inlined_call_operand.vmem [shape: f32[8,32], index: 0, kind: input, shape index: {}]
  %s1 = inlined_call_operand.vmem [shape: f32[8,64], index: 1, kind: input, shape index: {}, may-alias: {1,4}]
  %s2 = inlined_call_operand.hbm [shape: f32[64,128], index: 2, kind: input, shape index: {}]
  %s3 = inlined_call_operand.vmem [shape: f32[1,192], index: 3, kind: input, shape index: {}]
  %s4 = inlined_call_operand.vmem [shape: f32[8,64], index: 4, kind: output, shape index: {}, may-alias: {1,4}]
  %s5 = sld [smem:[#allocation0]]
  $region30: #{core_forward.1} parent=0
    _
  %s7 = ssub.s32 1, %s5
  %s8 = scalar_select 0, %s7, %s5
  $region1: #{core_forward.1} parent=0
    #allocation2 [shape = 'u8[32768]{0}', space=vmem, size = 0x8000, scoped, tag = 'input window, operand 2, single buffered']
    #allocation3 [shape = 's32[1]{0}', space=sflag, size = 0x4, scoped, tag = 'scoped memory for core_forward.1']
    %9 = vsyncpa [#allocation3], 0
    // Predicated region
    $region2: #{core_forward.1} parent=1 // pred_check
      _
    $region3: #{core_forward.1} parent=1 // pred_check_branch
      %11 = sbr.rel (0) target = $region5
    $region4: #{core_forward.1} parent=1 // pred_region
      _
    $region5: #{core_forward.1} parent=1 // pred_fallthru
      _
    // Predicated region
    $region6: #{core_forward.1} parent=1 // pred_check
      _
    $region7: #{core_forward.1} parent=1 // pred_check_branch
      %13 = sbr.rel (0) target = $region9
    $region8: #{core_forward.1} parent=1 // pred_region
      _
    $region9: #{core_forward.1} parent=1 // pred_fallthru
      _
    // Predicated region
    $region10: #{core_forward.1} parent=1 // pred_check
      _
    $region11: #{core_forward.1} parent=1 // pred_check_branch
      %15 = sbr.rel (0) target = $region13
    $region12: #{core_forward.1} parent=1 // pred_region
      %s17 = ssub.s32 1024, 1024
      %18 = vsyncadd [#allocation3], %s17
      %s19 = sshll.u32 [#allocation2], 4
      %s20 = int_to_ptr.vmem [resolvable:$true] %s19
      %25 = dma.hbm_to_vmem [thread:$0]  %s2, 1024, %s20, [#allocation3], 128, 128, 8
    $region13: #{core_forward.1} parent=1 // pred_fallthru
      _
    // Predicated region
    $region14: #{core_forward.1} parent=1 // pred_check
      _
    $region15: #{core_forward.1} parent=1 // pred_check_branch
      %27 = sbr.rel (0) target = $region17
    $region16: #{core_forward.1} parent=1 // pred_region
      _
    $region17: #{core_forward.1} parent=1 // pred_fallthru
      _
    // Predicated region
    $region18: #{core_forward.1} parent=1 // pred_check
      _
    $region19: #{core_forward.1} parent=1 // pred_check_branch
      %29 = sbr.rel (0) target = $region21
    $region20: #{core_forward.1} parent=1 // pred_region
      %30 = dma.done [#allocation3], 1024
    $region21: #{core_forward.1} parent=1 // pred_fallthru
      _
    %v31 = vld [vmem:[%s3] sm:$0x1]
    %v32 = vld [vmem:[%s3 + $0x1] sm:$0x1]
    %v33 = vld [vmem:[%s1] sm:$0xff]
    %v34 = vld [vmem:[%s0] sm:$0xff]
    %v35 = vld [vmem:[#allocation2] sm:$0xff]
    %v36 = vld [vmem:[#allocation2 + $0x8] sm:$0xff]
    %v37 = vld [vmem:[#allocation2 + $0x10] sm:$0xff]
    %v38 = vld [vmem:[#allocation2 + $0x18] sm:$0xff]
    %v39 = vld [vmem:[#allocation2 + $0x20] sm:$0xff]
    %v40 = vld [vmem:[#allocation2 + $0x28] sm:$0xff]
    %v41 = vld [vmem:[#allocation2 + $0x30] sm:$0xff]
    %v42 = vld [vmem:[#allocation2 + $0x38] sm:$0xff]
    %vm43 = vcmask 261120
    %v44 = vsel %vm43, %v33, 0.0
    %45 = vadd.xlane.f32.xlu0 %v44
    %v46 = vpop.xlane.xlu0 %45
    %v47 = vrcp.pop 32.0
    %v48 = vmul.f32 %v46, %v47
    %v49 = vsub.f32 %v33, %v48
    %v50 = vmul.f32 %v49, %v49
    %v51 = vsel %vm43, %v50, 0.0
    %52 = vadd.xlane.f32.xlu0 %v51
    %v53 = vpop.xlane.xlu0 %52
    %v54 = vmul.f32 %v53, %v47
    %v55 = vadd.f32 %v54, 1e-05
    %v56 = vrsqrt.pop %v55
    %v57 = vmul.f32 %v49, %v56
    %59 = vrot.lane.b32.xlu0 %v33, 96
    %v60 = vpop.permute.xlu0 %59
    %v62 = vsel %vm43, %v60, 0.0
    %63 = vadd.xlane.f32.xlu0 %v62
    %v64 = vpop.xlane.xlu0 %63
    %v65 = vmul.f32 %v64, %v47
    %v66 = vsub.f32 %v33, %v65
    %v67 = vmul.f32 %v66, %v66
    %69 = vrot.lane.b32.xlu0 %v67, 96
    %v70 = vpop.permute.xlu0 %69
    %v72 = vsel %vm43, %v70, 0.0
    %73 = vadd.xlane.f32.xlu0 %v72
    %v74 = vpop.xlane.xlu0 %73
    %v75 = vmul.f32 %v74, %v47
    %v76 = vadd.f32 %v75, 1e-05
    %v77 = vrsqrt.pop %v76
    %v78 = vmul.f32 %v66, %v77
    %v80 = vlaneseq
    %v81 = vshrl.u32 %v80, 7
    %v82 = vsub.s32 0, %v81
    %v83 = vrot.slane %v32, %v82
    %84 = vrot.lane.b32.xlu0 %v83, 32
    %v85 = vpop.permute.xlu0 %84
    %v87 = vmul.f32 %v78, %v85
    %v89 = vadd.f32 %v87, %v83
    %v91 = vsel %vm43, %v57, 0
    %93 = vmatprep.subr.mxu0 0.0
    %94 = vmatpush1.msra.mxu0 %v39
    %95 = vmatprep.subr.mxu0 0.0
    %96 = vmatpush1.msra.mxu0 %v40
    %97 = vmatprep.subr.mxu0 0.0
    %98 = vmatpush1.msra.mxu0 %v41
    %99 = vmatprep.subr.mxu0 0.0
    %100 = vmatpush1.msra.mxu0 %v42
    %101 = vmatprep.subr.mxu0 0.0
    %102 = vmatpush1.msra.mxu0 0.0
    %103 = vmatprep.subr.mxu0 0.0
    %104 = vmatpush1.msra.mxu0 0.0
    %105 = vmatprep.subr.mxu0 0.0
    %106 = vmatpush1.msra.mxu0 0.0
    %107 = vmatprep.subr.mxu0 0.0
    %108 = vmatpush1.msra.mxu0 0.0
    %109 = vmatprep.subr.mxu0 0.0
    %110 = vmatpush1.msra.mxu0 0.0
    %111 = vmatprep.subr.mxu0 0.0
    %112 = vmatpush1.msra.mxu0 0.0
    %113 = vmatprep.subr.mxu0 0.0
    %114 = vmatpush1.msra.mxu0 0.0
    %115 = vmatprep.subr.mxu0 0.0
    %116 = vmatpush1.msra.mxu0 0.0
    %117 = vmatprep.subr.mxu0 0.0
    %118 = vmatpush1.msra.mxu0 0.0
    %119 = vmatprep.subr.mxu0 0.0
    %120 = vmatpush1.msra.mxu0 0.0
    %121 = vmatprep.subr.mxu0 0.0
    %122 = vmatpush1.msra.mxu0 0.0
    %123 = vmatprep.subr.mxu0 0.0
    %124 = vmatpush1.msra.mxu0 0.0
    %125 = vmatprep.subr.mxu0 0.0
    %126 = vmatpush1.msra.mxu0 0.0
    %127 = vmatprep.subr.mxu0 0.0
    %128 = vmatpush1.msra.mxu0 0.0
    %129 = vmatprep.subr.mxu0 0.0
    %130 = vmatpush1.msra.mxu0 0.0
    %131 = vmatprep.subr.mxu0 0.0
    %132 = vmatpush1.msra.mxu0 0.0
    %133 = vmatprep.subr.mxu0 0.0
    %134 = vmatpush1.msra.mxu0 0.0
    %135 = vmatprep.subr.mxu0 0.0
    %136 = vmatpush1.msra.mxu0 0.0
    %137 = vmatprep.subr.mxu0 0.0
    %138 = vmatpush1.msra.mxu0 0.0
    %139 = vmatprep.subr.mxu0 0.0
    %140 = vmatpush1.msra.mxu0 0.0
    %141 = vmatprep.subr.mxu0 0.0
    %142 = vmatpush1.msra.mxu0 0.0
    %143 = vmatprep.subr.mxu0 0.0
    %144 = vmatpush1.msra.mxu0 0.0
    %145 = vmatprep.subr.mxu0 0.0
    %146 = vmatpush1.msra.mxu0 0.0
    %147 = vmatprep.subr.mxu0 0.0
    %148 = vmatpush1.msra.mxu0 0.0
    %149 = vmatprep.subr.mxu0 0.0
    %150 = vmatpush1.msra.mxu0 0.0
    %151 = vmatprep.subr.mxu0 0.0
    %152 = vmatpush1.msra.mxu0 0.0
    %153 = vmatprep.subr.mxu0 0.0
    %154 = vmatpush1.msra.mxu0 0.0
    %155 = vmatprep.subr.mxu0 0.0
    %156 = vmatpush1.msra.mxu0 0.0
    %157 = vmatprep.mubr.f32.mxu0 0.0
    %158 = vmatmul.mubr.f32.gmra.mrb[0].mxu0 %v91
    %v159 = vpop.f32.mrb[0].mxu0
    %v160 = vadd.f32 0.0, %v159
    %v161 = vpop.f32.mrb[0].mxu0
    %162 = vdwg.mxu0
    %v164 = vsel %vm43, %v34, 0
    %166 = vmatprep.subr.mxu0 0.0
    %167 = vmatpush1.msra.mxu0 %v35
    %168 = vmatprep.subr.mxu0 0.0
    %169 = vmatpush1.msra.mxu0 %v36
    %170 = vmatprep.subr.mxu0 0.0
    %171 = vmatpush1.msra.mxu0 %v37
    %172 = vmatprep.subr.mxu0 0.0
    %173 = vmatpush1.msra.mxu0 %v38
    %174 = vmatprep.subr.mxu0 0.0
    %175 = vmatpush1.msra.mxu0 0.0
    %176 = vmatprep.subr.mxu0 0.0
    %177 = vmatpush1.msra.mxu0 0.0
    %178 = vmatprep.subr.mxu0 0.0
    %179 = vmatpush1.msra.mxu0 0.0
    %180 = vmatprep.subr.mxu0 0.0
    %181 = vmatpush1.msra.mxu0 0.0
    %182 = vmatprep.subr.mxu0 0.0
    %183 = vmatpush1.msra.mxu0 0.0
    %184 = vmatprep.subr.mxu0 0.0
    %185 = vmatpush1.msra.mxu0 0.0
    %186 = vmatprep.subr.mxu0 0.0
    %187 = vmatpush1.msra.mxu0 0.0
    %188 = vmatprep.subr.mxu0 0.0
    %189 = vmatpush1.msra.mxu0 0.0
    %190 = vmatprep.subr.mxu0 0.0
    %191 = vmatpush1.msra.mxu0 0.0
    %192 = vmatprep.subr.mxu0 0.0
    %193 = vmatpush1.msra.mxu0 0.0
    %194 = vmatprep.subr.mxu0 0.0
    %195 = vmatpush1.msra.mxu0 0.0
    %196 = vmatprep.subr.mxu0 0.0
    %197 = vmatpush1.msra.mxu0 0.0
    %198 = vmatprep.subr.mxu0 0.0
    %199 = vmatpush1.msra.mxu0 0.0
    %200 = vmatprep.subr.mxu0 0.0
    %201 = vmatpush1.msra.mxu0 0.0
    %202 = vmatprep.subr.mxu0 0.0
    %203 = vmatpush1.msra.mxu0 0.0
    %204 = vmatprep.subr.mxu0 0.0
    %205 = vmatpush1.msra.mxu0 0.0
    %206 = vmatprep.subr.mxu0 0.0
    %207 = vmatpush1.msra.mxu0 0.0
    %208 = vmatprep.subr.mxu0 0.0
    %209 = vmatpush1.msra.mxu0 0.0
    %210 = vmatprep.subr.mxu0 0.0
    %211 = vmatpush1.msra.mxu0 0.0
    %212 = vmatprep.subr.mxu0 0.0
    %213 = vmatpush1.msra.mxu0 0.0
    %214 = vmatprep.subr.mxu0 0.0
    %215 = vmatpush1.msra.mxu0 0.0
    %216 = vmatprep.subr.mxu0 0.0
    %217 = vmatpush1.msra.mxu0 0.0
    %218 = vmatprep.subr.mxu0 0.0
    %219 = vmatpush1.msra.mxu0 0.0
    %220 = vmatprep.subr.mxu0 0.0
    %221 = vmatpush1.msra.mxu0 0.0
    %222 = vmatprep.subr.mxu0 0.0
    %223 = vmatpush1.msra.mxu0 0.0
    %224 = vmatprep.subr.mxu0 0.0
    %225 = vmatpush1.msra.mxu0 0.0
    %226 = vmatprep.subr.mxu0 0.0
    %227 = vmatpush1.msra.mxu0 0.0
    %228 = vmatprep.subr.mxu0 0.0
    %229 = vmatpush1.msra.mxu0 0.0
    %230 = vmatprep.mubr.f32.mxu0 0.0
    %231 = vmatmul.mubr.f32.gmra.mrb[0].mxu0 %v164
    %v232 = vpop.f32.mrb[0].mxu0
    %v233 = vadd.f32 %v160, %v232
    %v234 = vpop.f32.mrb[0].mxu0
    %235 = vdwg.mxu0
    %v237 = vlaneseq
    %v238 = vshrl.u32 %v237, 7
    %v239 = vsub.s32 0, %v238
    %v240 = vrot.slane %v31, %v239
    %v242 = vadd.f32 %v233, %v240
    %v243 = vxor.u32 %v242, 2147483648
    %v244 = vmul.f32 %v243, 1.442695
    %v245 = vpow.pop %v244
    %v246 = vadd.f32 %v245, 1.0
    %v247 = vrcp.pop %v246
    %v248 = vmul.f32 1.0, %v247
    %v249 = vtanh.pop %v242
    %v250 = vmul.f32 %v248, %v89
    %252 = vrot.lane.b32.xlu0 %v249, 64
    %v253 = vpop.permute.xlu0 %252
    %v255 = vmul.f32 %v248, %v253
    %257 = vrot.lane.b32.xlu0 %v255, 32
    %v258 = vpop.permute.xlu0 %257
    %v260 = vadd.f32 %v250, %v258
    %v261 = vtanh.pop %v260
    %263 = vrot.lane.b32.xlu0 %v261, 64
    %v264 = vpop.permute.xlu0 %263
    %v266 = vmul.f32 %v248, %v264
    %268 = vrot.lane.b32.xlu0 %v266, 32
    %v269 = vpop.permute.xlu0 %268
    %271 = vst.msk [vmem:[%s4] sm:$0xff] %vm43, %v269
    %vm272 = vcmask 523520
    %273 = vst.msk [vmem:[%s4] sm:$0xff] %vm272, %v260
    // Predicated region
    $region22: #{core_forward.1} parent=1 // pred_check
      _
    $region23: #{core_forward.1} parent=1 // pred_check_branch
      %275 = sbr.rel (0) target = $region25
    $region24: #{core_forward.1} parent=1 // pred_region
      _
    $region25: #{core_forward.1} parent=1 // pred_fallthru
      _
    // Predicated region
    $region26: #{core_forward.1} parent=1 // pred_check
      _
    $region27: #{core_forward.1} parent=1 // pred_check_branch
      %277 = sbr.rel (0) target = $region29
    $region28: #{core_forward.1} parent=1 // pred_region
      _
    $region29: #{core_forward.1} parent=1 // pred_fallthru
      _
    %278 = vsyncpa [#allocation3], 1

</llo_original>
